<compile_context>
chip_gen: v7x
topology: tpu7x:2x2x1
jax: 0.10.0
libtpu: 0.0.40
codegen_flags: <defaults>
</compile_context>

<pallas_src>
import functools

import jax
import jax.numpy as jnp
from jax import lax
from jax.experimental import pallas as pl
from jax.experimental.pallas import tpu as pltpu


def _round_up(x, m):
    return (x + m - 1) // m * m


def _pick_tile_n(N, tile_n):
    """Largest lane tile (multiple of 128, <= tile_n) keeping N padding <~6%."""
    np128 = _round_up(N, 128)
    limit = np128 + max(np128 // 16, 128)
    tn_max = min(_round_up(tile_n, 128), np128)
    tn = 128
    for cand in range(128, tn_max + 1, 128):
        if _round_up(N, cand) <= limit:
            tn = cand
    return tn


def binary_head_kernel(x_ref, w_ref, b_ref, o_ref, *, s):
    # x_ref : (TB, E)  f32 activation tile (same block for every N step)
    # w_ref : (E, TN)  bf16 weight tile
    # b_ref : (1, TN)  f32 bias tile, already multiplied by s
    # o_ref : (TB, TN) logits tile (bf16 by default)
    x = x_ref[...]
    sumsq = jnp.sum(x * x, axis=1, keepdims=True)
    inv = lax.rsqrt(sumsq + 1e-12)              # eps: all-zero (padded) rows -> 0
    xn = (x * (inv * s)).astype(jnp.bfloat16)   # fold s here; bias carries s too
    logit = jnp.dot(xn, w_ref[...], preferred_element_type=jnp.float32)
    o_ref[...] = (logit + b_ref[...]).astype(o_ref.dtype)


def binary_head(fea, weight_t, bias, *, s=16.0, tile_n=2048, tile_b=None,
                out_dtype=jnp.bfloat16, vmem_budget_bytes=40 << 20):
    """fea: (B, E) f32, weight_t: (E, N) (streamed as bf16), bias: (N,)
    -> logits (B, N) in out_dtype."""
    B, E = fea.shape
    E2, N = weight_t.shape
    assert E == E2

    # ---- lane (N) tile ------------------------------------------------------
    tn = _pick_tile_n(N, tile_n)
    # Shrink tn if the weight double-buffer alone would eat over half the budget.
    while tn > 128 and (2 * E * tn * 2 + 2 * 8 * tn * 4) > vmem_budget_bytes // 2:
        tn -= 128
    Np = _round_up(N, tn)

    # ---- batch (B) tile: as large as the VMEM budget allows ----------------
    # Double-buffered pipeline buffers:
    #   fea   : 2 * tb * E * 4      (f32)
    #   weight: 2 * E  * tn * 2     (bf16)
    #   bias  : 2 * 8  * tn * 4     (f32, sublane-padded)
    #   out   : 2 * tb * tn * outB
    out_bytes = jnp.dtype(out_dtype).itemsize
    fixed = 2 * E * tn * 2 + 2 * 8 * tn * 4
    per_row = 2 * E * 4 + 2 * tn * out_bytes
    avail = max(vmem_budget_bytes - fixed, 0)
    tb_cap = max((avail // per_row) // 16 * 16, 16)

    b16 = _round_up(B, 16)                       # bf16 LHS: 16-sublane multiple
    tb = b16
    if tile_b is not None:
        tb = min(tb, _round_up(tile_b, 16))
    tb = max(min(tb, tb_cap), 16)
    nb = -(-b16 // tb)                           # number of batch tiles
    tb = _round_up(-(-b16 // nb), 16)            # rebalance -> minimal padding
    Bp = tb * nb

    # ---- pad operands -------------------------------------------------------
    fea_p = fea.astype(jnp.float32)
    if Bp != B:
        fea_p = jnp.pad(fea_p, ((0, Bp - B), (0, 0)))

    w = weight_t.astype(jnp.bfloat16)            # stream bf16 into the MXU
    if Np != N:
        w = jnp.pad(w, ((0, 0), (0, Np - N)))

    b_s = bias.astype(jnp.float32) * s           # fold s into the bias
    if Np != N:
        b_s = jnp.pad(b_s, (0, Np - N))
    b_s = b_s.reshape(1, Np)

    grid = (Bp // tb, Np // tn)

    vmem_need = fixed + per_row * tb
    vmem_limit = min(max(int(vmem_need * 1.25) + (2 << 20), 32 << 20), 56 << 20)

    out = pl.pallas_call(
        functools.partial(binary_head_kernel, s=s),
        out_shape=jax.ShapeDtypeStruct((Bp, Np), out_dtype),
        grid_spec=pltpu.PrefetchScalarGridSpec(
            num_scalar_prefetch=0,
            grid=grid,
            in_specs=[
                pl.BlockSpec((tb, E), lambda i, j: (i, 0)),   # fea tile (resident over j)
                pl.BlockSpec((E, tn), lambda i, j: (0, j)),   # bf16 weight tile
                pl.BlockSpec((1, tn), lambda i, j: (0, j)),   # bias*s tile
            ],
            out_specs=pl.BlockSpec((tb, tn), lambda i, j: (i, j)),
        ),
        compiler_params=pltpu.CompilerParams(
            dimension_semantics=("parallel", "parallel"),
            vmem_limit_bytes=vmem_limit,
        ),
    )(fea_p, w, b_s)

    return out[:B, :N]


def binary_head_reference(fea, weight_t, bias, *, s=16.0):
    x = fea.astype(jnp.float32)
    inv = lax.rsqrt(jnp.sum(x * x, axis=1, keepdims=True) + 1e-12)
    xn = x * inv
    return (xn @ weight_t.astype(jnp.float32) + bias.astype(jnp.float32)) * s


if __name__ == "__main__":
    # Small shapes consistent with the module (emb_size -> num_class head).
    s = 16.0
    key = jax.random.PRNGKey(0)

    # Case 1: aligned shapes.
    B, E, N = 8, 256, 512
    k_fea, k_w, k_b = jax.random.split(key, 3)
    fea = jax.random.normal(k_fea, (B, E), dtype=jnp.float32)
    weight_t = (jax.random.normal(k_w, (E, N), dtype=jnp.float32) * 0.02
                ).astype(jnp.bfloat16)          # params stored/streamed as bf16
    bias = jax.random.normal(k_b, (N,), dtype=jnp.float32) * 0.01

    out = jax.block_until_ready(binary_head(fea, weight_t, bias, s=s))
    ref = binary_head_reference(fea, weight_t, bias, s=s)
    assert out.shape == (B, N)
    assert jnp.allclose(out.astype(jnp.float32), ref, atol=2e-2, rtol=2e-2), (
        f"mismatch vs reference: {jnp.max(jnp.abs(out.astype(jnp.float32) - ref))}")

    # Case 2: non-aligned B / N (exercises padding, like num_class=10008).
    B2, N2 = 5, 300
    k_fea2, k_w2, k_b2 = jax.random.split(jax.random.PRNGKey(1), 3)
    fea2 = jax.random.normal(k_fea2, (B2, E), dtype=jnp.float32)
    weight_t2 = (jax.random.normal(k_w2, (E, N2), dtype=jnp.float32) * 0.02
                 ).astype(jnp.bfloat16)
    bias2 = jax.random.normal(k_b2, (N2,), dtype=jnp.float32) * 0.01

    out2 = jax.block_until_ready(binary_head(fea2, weight_t2, bias2, s=s))
    ref2 = binary_head_reference(fea2, weight_t2, bias2, s=s)
    assert out2.shape == (B2, N2)
    assert jnp.allclose(out2.astype(jnp.float32), ref2, atol=2e-2, rtol=2e-2), (
        f"mismatch vs reference (padded case): "
        f"{jnp.max(jnp.abs(out2.astype(jnp.float32) - ref2))}")

    print("KERNEL_OK")
</pallas_src>

<mosaic_0001>
module attributes {stable_mosaic.version = 11 : i64} {
  func.func @binary_head_kernel(%arg0: i32, %arg1: i32, %arg2: memref<16x256xf32, #tpu.memory_space<vmem>>, %arg3: memref<256x512xbf16, #tpu.memory_space<vmem>>, %arg4: memref<1x512xf32, #tpu.memory_space<vmem>>, %arg5: memref<16x512xbf16, #tpu.memory_space<vmem>>) attributes {dimension_semantics = [#tpu.dimension_semantics<parallel>, #tpu.dimension_semantics<parallel>], iteration_bounds = array<i64: 1, 1>, scalar_prefetch = 0 : i64, scratch_operands = 0 : i64, tpu.core_type = #tpu.core_type<tc>, window_params = [{transform_indices = @transform_0, window_bounds = array<i64: 16, 256>}, {transform_indices = @transform_1, window_bounds = array<i64: 256, 512>}, {transform_indices = @transform_2, window_bounds = array<i64: 1, 512>}, {transform_indices = @transform_3, window_bounds = array<i64: 16, 512>}]} {
    %c0 = arith.constant 0 : index
    %c0_0 = arith.constant 0 : index
    %0 = vector.load %arg2[%c0, %c0_0] : memref<16x256xf32, #tpu.memory_space<vmem>>, vector<16x256xf32>
    %1 = arith.mulf %0, %0 : vector<16x256xf32>
    %cst = arith.constant dense<0.000000e+00> : vector<16xf32>
    %2 = vector.multi_reduction <add>, %1, %cst [1] : vector<16x256xf32> to vector<16xf32>
    %3 = vector.shape_cast %2 : vector<16xf32> to vector<16x1xf32>
    %cst_1 = arith.constant 9.99999996E-13 : f32
    %4 = vector.broadcast %cst_1 : f32 to vector<16x1xf32>
    %5 = arith.addf %3, %4 : vector<16x1xf32>
    %6 = math.rsqrt %5 : vector<16x1xf32>
    %cst_2 = arith.constant 1.600000e+01 : f32
    %7 = vector.broadcast %cst_2 : f32 to vector<16x1xf32>
    %8 = arith.mulf %6, %7 : vector<16x1xf32>
    %9 = vector.broadcast %8 : vector<16x1xf32> to vector<16x256xf32>
    %10 = arith.mulf %0, %9 : vector<16x256xf32>
    %11 = arith.truncf %10 : vector<16x256xf32> to vector<16x256xbf16>
    %c0_3 = arith.constant 0 : index
    %c0_4 = arith.constant 0 : index
    %12 = vector.load %arg3[%c0_3, %c0_4] : memref<256x512xbf16, #tpu.memory_space<vmem>>, vector<256x512xbf16>
    %cst_5 = arith.constant dense<0.000000e+00> : vector<16x512xf32>
    %13 = tpu.matmul %11, %12, %cst_5 {dimension_numbers = #tpu.dot_dimension_numbers<[1], [0], [0], [1], [0, 0, 1, 1], [], []>} : vector<16x256xbf16>, vector<256x512xbf16>, vector<16x512xf32> -> vector<16x512xf32>
    %c0_6 = arith.constant 0 : index
    %c0_7 = arith.constant 0 : index
    %14 = vector.load %arg4[%c0_6, %c0_7] : memref<1x512xf32, #tpu.memory_space<vmem>>, vector<1x512xf32>
    %15 = vector.broadcast %14 : vector<1x512xf32> to vector<16x512xf32>
    %16 = arith.addf %13, %15 : vector<16x512xf32>
    %17 = arith.truncf %16 : vector<16x512xf32> to vector<16x512xbf16>
    %c0_8 = arith.constant 0 : index
    %c0_9 = arith.constant 0 : index
    %18 = vector.load %arg5[%c0_8, %c0_9] : memref<16x512xbf16, #tpu.memory_space<vmem>>, vector<16x512xbf16>
    tpu.vector_store %arg5[%c0_8, %c0_9], %17 {strides = array<i32>} : memref<16x512xbf16, #tpu.memory_space<vmem>>, vector<16x512xbf16>,
    return
  }
  func.func @transform_0(%arg0: i32, %arg1: i32) -> (i32, i32) {
    %c0_i32 = arith.constant 0 : i32
    %c0_i32_0 = arith.constant 0 : i32
    return %arg0, %c0_i32 : i32, i32
  }
  func.func @transform_1(%arg0: i32, %arg1: i32) -> (i32, i32) {
    %c0_i32 = arith.constant 0 : i32
    %c0_i32_0 = arith.constant 0 : i32
    return %c0_i32, %arg1 : i32, i32
  }
  func.func @transform_2(%arg0: i32, %arg1: i32) -> (i32, i32) {
    %c0_i32 = arith.constant 0 : i32
    %c0_i32_0 = arith.constant 0 : i32
    return %c0_i32, %arg1 : i32, i32
  }
  func.func @transform_3(%arg0: i32, %arg1: i32) -> (i32, i32) {
    %c0_i32 = arith.constant 0 : i32
    return %arg0, %arg1 : i32, i32
  }
}

</mosaic_0001>

<llo_original>
// kernel: tpu_custom_call.1
$region0: #{tpu_custom_call.1}
  #allocation0 [shape = 'u32[]', space=smem, size = 0x4, offset = 0x4, fixed_abs, tag = 'smem constant byte address 0x4 - core index']
  #allocation1 [shape = 'u32[144,128]{1,0:T(1,128)}', space=vmem, size = 0x12000, scoped, tag = 'internal scratch']
  %s0 = inlined_call_operand.hbm [shape: f32[16,256], index: 0, kind: input, shape index: {}]
  %s1 = inlined_call_operand.hbm [shape: bf16[256,512], index: 1, kind: input, shape index: {}]
  %s2 = inlined_call_operand.vmem [shape: f32[1,512], index: 2, kind: input, shape index: {}]
  %s3 = inlined_call_operand.hbm [shape: bf16[16,512], index: 3, kind: output, shape index: {}]
  %s4 = sld [smem:[#allocation0]]
  $region30: #{tpu_custom_call.1} parent=0
    _
  %s6 = ssub.s32 1, %s4
  %s7 = scalar_select 0, %s6, %s4
  $region1: #{tpu_custom_call.1} parent=0
    #allocation2 [shape = 'u8[16384]{0}', space=vmem, size = 0x4000, scoped, tag = 'input window, operand 0, single buffered']
    #allocation3 [shape = 's32[1]{0}', space=sflag, size = 0x4, scoped, tag = 'scoped memory for tpu_custom_call.1']
    #allocation4 [shape = 's32[1]{0}', space=sflag, size = 0x4, scoped, tag = 'scoped memory for tpu_custom_call.1']
    #allocation5 [shape = 'u8[262144]{0}', space=vmem, size = 0x40000, scoped, tag = 'input window, operand 1, single buffered']
    #allocation6 [shape = 's32[1]{0}', space=sflag, size = 0x4, scoped, tag = 'scoped memory for tpu_custom_call.1']
    #allocation7 [shape = 'u8[16384]{0}', space=vmem, size = 0x4000, scoped, tag = 'output window, operand 0, single buffered']
    %8 = vsyncpa [#allocation3], 0
    %9 = vsyncpa [#allocation6], 0
    %10 = vsyncpa [#allocation4], 0
    // Predicated region
    $region2: #{tpu_custom_call.1} parent=1 // pred_check
      _
    $region3: #{tpu_custom_call.1} parent=1 // pred_check_branch
      %12 = sbr.rel (0) target = $region5
    $region4: #{tpu_custom_call.1} parent=1 // pred_region
      %s14 = ssub.s32 512, 512
      %15 = vsyncadd [#allocation3], %s14
      %s16 = sshll.u32 [#allocation2], 4
      %s17 = int_to_ptr.vmem [resolvable:$true] %s16
      %22 = dma.hbm_to_vmem [thread:$0]  %s0, 512, %s17, [#allocation3], 256, 256, 16
    $region5: #{tpu_custom_call.1} parent=1 // pred_fallthru
      _
    // Predicated region
    $region6: #{tpu_custom_call.1} parent=1 // pred_check
      _
    $region7: #{tpu_custom_call.1} parent=1 // pred_check_branch
      %24 = sbr.rel (0) target = $region9
    $region8: #{tpu_custom_call.1} parent=1 // pred_region
      %s26 = ssub.s32 8192, 8192
      %27 = vsyncadd [#allocation6], %s26
      %s28 = sshll.u32 [#allocation5], 4
      %s29 = int_to_ptr.vmem [resolvable:$true] %s28
      %34 = dma.hbm_to_vmem [thread:$0]  %s1, 8192, %s29, [#allocation6], 256, 256, 16
    $region9: #{tpu_custom_call.1} parent=1 // pred_fallthru
      _
    // Predicated region
    $region10: #{tpu_custom_call.1} parent=1 // pred_check
      _
    $region11: #{tpu_custom_call.1} parent=1 // pred_check_branch
      %36 = sbr.rel (0) target = $region13
    $region12: #{tpu_custom_call.1} parent=1 // pred_region
      _
    $region13: #{tpu_custom_call.1} parent=1 // pred_fallthru
      _
    // Predicated region
    $region14: #{tpu_custom_call.1} parent=1 // pred_check
      _
    $region15: #{tpu_custom_call.1} parent=1 // pred_check_branch
      %38 = sbr.rel (0) target = $region17
    $region16: #{tpu_custom_call.1} parent=1 // pred_region
      %39 = dma.done [#allocation3], 512
    $region17: #{tpu_custom_call.1} parent=1 // pred_fallthru
      _
    // Predicated region
    $region18: #{tpu_custom_call.1} parent=1 // pred_check
      _
    $region19: #{tpu_custom_call.1} parent=1 // pred_check_branch
      %41 = sbr.rel (0) target = $region21
    $region20: #{tpu_custom_call.1} parent=1 // pred_region
      %42 = dma.done [#allocation6], 8192
    $region21: #{tpu_custom_call.1} parent=1 // pred_fallthru
      _
    %v43 = vld [vmem:[#allocation2] sm:$0xff]
    %v44 = vld [vmem:[#allocation2 + $0x8] sm:$0xff]
    %v45 = vld [vmem:[#allocation2 + $0x10] sm:$0xff]
    %v46 = vld [vmem:[#allocation2 + $0x18] sm:$0xff]
    %v47 = vmul.f32 %v43, %v43
    %v48 = vmul.f32 %v44, %v44
    %v49 = vmul.f32 %v45, %v45
    %v50 = vmul.f32 %v46, %v46
    %v51 = vadd.f32 %v47, %v48
    %52 = vadd.xlane.f32.xlu0 %v51
    %v53 = vpop.xlane.xlu0 %52
    %v54 = vadd.f32 %v49, %v50
    %55 = vadd.xlane.f32.xlu0 %v54
    %v56 = vpop.xlane.xlu0 %55
    %v57 = vadd.f32 %v53, 1e-12
    %v58 = vadd.f32 %v56, 1e-12
    %v59 = vrsqrt.pop %v57
    %v60 = vrsqrt.pop %v58
    %v61 = vmul.f32 %v59, 16.0
    %v62 = vmul.f32 %v60, 16.0
    %v63 = vmul.f32 %v43, %v61
    %v64 = vmul.f32 %v44, %v61
    %v65 = vmul.f32 %v45, %v62
    %v66 = vmul.f32 %v46, %v62
    %v67 = vpack.c.bf16 %v65, %v63
    %v68 = vpack.c.bf16 %v66, %v64
    %v69 = vld [vmem:[#allocation5] sm:$0xff]
    %v70 = vld [vmem:[#allocation5 + $0x8] sm:$0xff]
    %v71 = vld [vmem:[#allocation5 + $0x10] sm:$0xff]
    %v72 = vld [vmem:[#allocation5 + $0x18] sm:$0xff]
    %v73 = vld [vmem:[#allocation5 + $0x20] sm:$0xff]
    %v74 = vld [vmem:[#allocation5 + $0x28] sm:$0xff]
    %v75 = vld [vmem:[#allocation5 + $0x30] sm:$0xff]
    %v76 = vld [vmem:[#allocation5 + $0x38] sm:$0xff]
    %v77 = vld [vmem:[#allocation5 + $0x40] sm:$0xff]
    %v78 = vld [vmem:[#allocation5 + $0x48] sm:$0xff]
    %v79 = vld [vmem:[#allocation5 + $0x50] sm:$0xff]
    %v80 = vld [vmem:[#allocation5 + $0x58] sm:$0xff]
    %v81 = vld [vmem:[#allocation5 + $0x60] sm:$0xff]
    %v82 = vld [vmem:[#allocation5 + $0x68] sm:$0xff]
    %v83 = vld [vmem:[#allocation5 + $0x70] sm:$0xff]
    %v84 = vld [vmem:[#allocation5 + $0x78] sm:$0xff]
    %v85 = vld [vmem:[#allocation5 + $0x80] sm:$0xff]
    %v86 = vld [vmem:[#allocation5 + $0x88] sm:$0xff]
    %v87 = vld [vmem:[#allocation5 + $0x90] sm:$0xff]
    %v88 = vld [vmem:[#allocation5 + $0x98] sm:$0xff]
    %v89 = vld [vmem:[#allocation5 + $0xa0] sm:$0xff]
    %v90 = vld [vmem:[#allocation5 + $0xa8] sm:$0xff]
    %v91 = vld [vmem:[#allocation5 + $0xb0] sm:$0xff]
    %v92 = vld [vmem:[#allocation5 + $0xb8] sm:$0xff]
    %v93 = vld [vmem:[#allocation5 + $0xc0] sm:$0xff]
    %v94 = vld [vmem:[#allocation5 + $0xc8] sm:$0xff]
    %v95 = vld [vmem:[#allocation5 + $0xd0] sm:$0xff]
    %v96 = vld [vmem:[#allocation5 + $0xd8] sm:$0xff]
    %v97 = vld [vmem:[#allocation5 + $0xe0] sm:$0xff]
    %v98 = vld [vmem:[#allocation5 + $0xe8] sm:$0xff]
    %v99 = vld [vmem:[#allocation5 + $0xf0] sm:$0xff]
    %v100 = vld [vmem:[#allocation5 + $0xf8] sm:$0xff]
    %v101 = vld [vmem:[#allocation5 + $0x100] sm:$0xff]
    %v102 = vld [vmem:[#allocation5 + $0x108] sm:$0xff]
    %v103 = vld [vmem:[#allocation5 + $0x110] sm:$0xff]
    %v104 = vld [vmem:[#allocation5 + $0x118] sm:$0xff]
    %v105 = vld [vmem:[#allocation5 + $0x120] sm:$0xff]
    %v106 = vld [vmem:[#allocation5 + $0x128] sm:$0xff]
    %v107 = vld [vmem:[#allocation5 + $0x130] sm:$0xff]
    %v108 = vld [vmem:[#allocation5 + $0x138] sm:$0xff]
    %v109 = vld [vmem:[#allocation5 + $0x140] sm:$0xff]
    %v110 = vld [vmem:[#allocation5 + $0x148] sm:$0xff]
    %v111 = vld [vmem:[#allocation5 + $0x150] sm:$0xff]
    %v112 = vld [vmem:[#allocation5 + $0x158] sm:$0xff]
    %v113 = vld [vmem:[#allocation5 + $0x160] sm:$0xff]
    %v114 = vld [vmem:[#allocation5 + $0x168] sm:$0xff]
    %v115 = vld [vmem:[#allocation5 + $0x170] sm:$0xff]
    %v116 = vld [vmem:[#allocation5 + $0x178] sm:$0xff]
    %v117 = vld [vmem:[#allocation5 + $0x180] sm:$0xff]
    %v118 = vld [vmem:[#allocation5 + $0x188] sm:$0xff]
    %v119 = vld [vmem:[#allocation5 + $0x190] sm:$0xff]
    %v120 = vld [vmem:[#allocation5 + $0x198] sm:$0xff]
    %v121 = vld [vmem:[#allocation5 + $0x1a0] sm:$0xff]
    %v122 = vld [vmem:[#allocation5 + $0x1a8] sm:$0xff]
    %v123 = vld [vmem:[#allocation5 + $0x1b0] sm:$0xff]
    %v124 = vld [vmem:[#allocation5 + $0x1b8] sm:$0xff]
    %v125 = vld [vmem:[#allocation5 + $0x1c0] sm:$0xff]
    %v126 = vld [vmem:[#allocation5 + $0x1c8] sm:$0xff]
    %v127 = vld [vmem:[#allocation5 + $0x1d0] sm:$0xff]
    %v128 = vld [vmem:[#allocation5 + $0x1d8] sm:$0xff]
    %v129 = vld [vmem:[#allocation5 + $0x1e0] sm:$0xff]
    %v130 = vld [vmem:[#allocation5 + $0x1e8] sm:$0xff]
    %v131 = vld [vmem:[#allocation5 + $0x1f0] sm:$0xff]
    %v132 = vld [vmem:[#allocation5 + $0x1f8] sm:$0xff]
    %v133 = vld [vmem:[%s2] sm:$0xf]
    %v135 = vlaneseq
    %v136 = vshrl.u32 %v135, 7
    %v137 = vsub.s32 0, %v136
    %v138 = vrot.slane %v133, %v137
    %v139 = vlaneseq
    %v140 = vshrl.u32 %v139, 7
    %v141 = vsub.s32 1, %v140
    %v142 = vrot.slane %v133, %v141
    %v143 = vlaneseq
    %v144 = vshrl.u32 %v143, 7
    %v145 = vsub.s32 2, %v144
    %v146 = vrot.slane %v133, %v145
    %v147 = vlaneseq
    %v148 = vshrl.u32 %v147, 7
    %v149 = vsub.s32 3, %v148
    %v150 = vrot.slane %v133, %v149
    %v219 = vunpack.c.l.b16 %v69
    %v220 = vunpack.c.h.b16 %v69
    %v221 = vunpack.c.l.b16 %v70
    %v222 = vunpack.c.h.b16 %v70
    %v223 = vunpack.c.l.b16 %v71
    %v224 = vunpack.c.h.b16 %v71
    %v225 = vunpack.c.l.b16 %v72
    %v226 = vunpack.c.h.b16 %v72
    %v227 = vunpack.c.l.b16 %v73
    %v228 = vunpack.c.h.b16 %v73
    %v229 = vunpack.c.l.b16 %v74
    %v230 = vunpack.c.h.b16 %v74
    %v231 = vunpack.c.l.b16 %v75
    %v232 = vunpack.c.h.b16 %v75
    %v233 = vunpack.c.l.b16 %v76
    %v234 = vunpack.c.h.b16 %v76
    %v235 = vunpack.c.l.b16 %v77
    %v236 = vunpack.c.h.b16 %v77
    %v237 = vunpack.c.l.b16 %v78
    %v238 = vunpack.c.h.b16 %v78
    %v239 = vunpack.c.l.b16 %v79
    %v240 = vunpack.c.h.b16 %v79
    %v241 = vunpack.c.l.b16 %v80
    %v242 = vunpack.c.h.b16 %v80
    %v243 = vunpack.c.l.b16 %v81
    %v244 = vunpack.c.h.b16 %v81
    %v245 = vunpack.c.l.b16 %v82
    %v246 = vunpack.c.h.b16 %v82
    %v247 = vunpack.c.l.b16 %v83
    %v248 = vunpack.c.h.b16 %v83
    %v249 = vunpack.c.l.b16 %v84
    %v250 = vunpack.c.h.b16 %v84
    %v251 = vunpack.c.l.b16 %v85
    %v252 = vunpack.c.h.b16 %v85
    %v253 = vunpack.c.l.b16 %v86
    %v254 = vunpack.c.h.b16 %v86
    %v255 = vunpack.c.l.b16 %v87
    %v256 = vunpack.c.h.b16 %v87
    %v257 = vunpack.c.l.b16 %v88
    %v258 = vunpack.c.h.b16 %v88
    %v259 = vunpack.c.l.b16 %v89
    %v260 = vunpack.c.h.b16 %v89
    %v261 = vunpack.c.l.b16 %v90
    %v262 = vunpack.c.h.b16 %v90
    %v263 = vunpack.c.l.b16 %v91
    %v264 = vunpack.c.h.b16 %v91
    %v265 = vunpack.c.l.b16 %v92
    %v266 = vunpack.c.h.b16 %v92
    %v267 = vunpack.c.l.b16 %v93
    %v268 = vunpack.c.h.b16 %v93
    %v269 = vunpack.c.l.b16 %v94
    %v270 = vunpack.c.h.b16 %v94
    %v271 = vunpack.c.l.b16 %v95
    %v272 = vunpack.c.h.b16 %v95
    %v273 = vunpack.c.l.b16 %v96
    %v274 = vunpack.c.h.b16 %v96
    %v275 = vunpack.c.l.b16 %v97
    %v276 = vunpack.c.h.b16 %v97
    %v277 = vunpack.c.l.b16 %v98
    %v278 = vunpack.c.h.b16 %v98
    %v279 = vunpack.c.l.b16 %v99
    %v280 = vunpack.c.h.b16 %v99
    %v281 = vunpack.c.l.b16 %v100
    %v282 = vunpack.c.h.b16 %v100
    %v283 = vunpack.c.l.b16 %v101
    %v284 = vunpack.c.h.b16 %v101
    %v285 = vunpack.c.l.b16 %v102
    %v286 = vunpack.c.h.b16 %v102
    %v287 = vunpack.c.l.b16 %v103
    %v288 = vunpack.c.h.b16 %v103
    %v289 = vunpack.c.l.b16 %v104
    %v290 = vunpack.c.h.b16 %v104
    %v291 = vunpack.c.l.b16 %v105
    %v292 = vunpack.c.h.b16 %v105
    %v293 = vunpack.c.l.b16 %v106
    %v294 = vunpack.c.h.b16 %v106
    %v295 = vunpack.c.l.b16 %v107
    %v296 = vunpack.c.h.b16 %v107
    %v297 = vunpack.c.l.b16 %v108
    %v298 = vunpack.c.h.b16 %v108
    %v299 = vunpack.c.l.b16 %v109
    %v300 = vunpack.c.h.b16 %v109
    %v301 = vunpack.c.l.b16 %v110
    %v302 = vunpack.c.h.b16 %v110
    %v303 = vunpack.c.l.b16 %v111
    %v304 = vunpack.c.h.b16 %v111
    %v305 = vunpack.c.l.b16 %v112
    %v306 = vunpack.c.h.b16 %v112
    %v307 = vunpack.c.l.b16 %v113
    %v308 = vunpack.c.h.b16 %v113
    %v309 = vunpack.c.l.b16 %v114
    %v310 = vunpack.c.h.b16 %v114
    %v311 = vunpack.c.l.b16 %v115
    %v312 = vunpack.c.h.b16 %v115
    %v313 = vunpack.c.l.b16 %v116
    %v314 = vunpack.c.h.b16 %v116
    %v315 = vunpack.c.l.b16 %v117
    %v316 = vunpack.c.h.b16 %v117
    %v317 = vunpack.c.l.b16 %v118
    %v318 = vunpack.c.h.b16 %v118
    %v319 = vunpack.c.l.b16 %v119
    %v320 = vunpack.c.h.b16 %v119
    %v321 = vunpack.c.l.b16 %v120
    %v322 = vunpack.c.h.b16 %v120
    %v323 = vunpack.c.l.b16 %v121
    %v324 = vunpack.c.h.b16 %v121
    %v325 = vunpack.c.l.b16 %v122
    %v326 = vunpack.c.h.b16 %v122
    %v327 = vunpack.c.l.b16 %v123
    %v328 = vunpack.c.h.b16 %v123
    %v329 = vunpack.c.l.b16 %v124
    %v330 = vunpack.c.h.b16 %v124
    %v331 = vunpack.c.l.b16 %v125
    %v332 = vunpack.c.h.b16 %v125
    %v333 = vunpack.c.l.b16 %v126
    %v334 = vunpack.c.h.b16 %v126
    %v335 = vunpack.c.l.b16 %v127
    %v336 = vunpack.c.h.b16 %v127
    %v337 = vunpack.c.l.b16 %v128
    %v338 = vunpack.c.h.b16 %v128
    %v339 = vunpack.c.l.b16 %v129
    %v340 = vunpack.c.h.b16 %v129
    %v341 = vunpack.c.l.b16 %v130
    %v342 = vunpack.c.h.b16 %v130
    %v343 = vunpack.c.l.b16 %v131
    %v344 = vunpack.c.h.b16 %v131
    %v345 = vunpack.c.l.b16 %v132
    %v346 = vunpack.c.h.b16 %v132
    %v347 = vpack.c.b16 %v223, %v219
    %v348 = vpack.c.b16 %v224, %v220
    %v349 = vpack.c.b16 %v225, %v221
    %v350 = vpack.c.b16 %v226, %v222
    %v351 = vpack.c.b16 %v231, %v227
    %v352 = vpack.c.b16 %v232, %v228
    %v353 = vpack.c.b16 %v233, %v229
    %v354 = vpack.c.b16 %v234, %v230
    %v355 = vpack.c.b16 %v239, %v235
    %v356 = vpack.c.b16 %v240, %v236
    %v357 = vpack.c.b16 %v241, %v237
    %v358 = vpack.c.b16 %v242, %v238
    %v359 = vpack.c.b16 %v247, %v243
    %v360 = vpack.c.b16 %v248, %v244
    %v361 = vpack.c.b16 %v249, %v245
    %v362 = vpack.c.b16 %v250, %v246
    %v363 = vpack.c.b16 %v255, %v251
    %v364 = vpack.c.b16 %v256, %v252
    %v365 = vpack.c.b16 %v257, %v253
    %v366 = vpack.c.b16 %v258, %v254
    %v367 = vpack.c.b16 %v263, %v259
    %v368 = vpack.c.b16 %v264, %v260
    %v369 = vpack.c.b16 %v265, %v261
    %v370 = vpack.c.b16 %v266, %v262
    %v371 = vpack.c.b16 %v271, %v267
    %v372 = vpack.c.b16 %v272, %v268
    %v373 = vpack.c.b16 %v273, %v269
    %v374 = vpack.c.b16 %v274, %v270
    %v375 = vpack.c.b16 %v279, %v275
    %v376 = vpack.c.b16 %v280, %v276
    %v377 = vpack.c.b16 %v281, %v277
    %v378 = vpack.c.b16 %v282, %v278
    %v379 = vpack.c.b16 %v287, %v283
    %v380 = vpack.c.b16 %v288, %v284
    %v381 = vpack.c.b16 %v289, %v285
    %v382 = vpack.c.b16 %v290, %v286
    %v383 = vpack.c.b16 %v295, %v291
    %v384 = vpack.c.b16 %v296, %v292
    %v385 = vpack.c.b16 %v297, %v293
    %v386 = vpack.c.b16 %v298, %v294
    %v387 = vpack.c.b16 %v303, %v299
    %v388 = vpack.c.b16 %v304, %v300
    %v389 = vpack.c.b16 %v305, %v301
    %v390 = vpack.c.b16 %v306, %v302
    %v391 = vpack.c.b16 %v311, %v307
    %v392 = vpack.c.b16 %v312, %v308
    %v393 = vpack.c.b16 %v313, %v309
    %v394 = vpack.c.b16 %v314, %v310
    %v395 = vpack.c.b16 %v319, %v315
    %v396 = vpack.c.b16 %v320, %v316
    %v397 = vpack.c.b16 %v321, %v317
    %v398 = vpack.c.b16 %v322, %v318
    %v399 = vpack.c.b16 %v327, %v323
    %v400 = vpack.c.b16 %v328, %v324
    %v401 = vpack.c.b16 %v329, %v325
    %v402 = vpack.c.b16 %v330, %v326
    %v403 = vpack.c.b16 %v335, %v331
    %v404 = vpack.c.b16 %v336, %v332
    %v405 = vpack.c.b16 %v337, %v333
    %v406 = vpack.c.b16 %v338, %v334
    %v407 = vpack.c.b16 %v343, %v339
    %v408 = vpack.c.b16 %v344, %v340
    %v409 = vpack.c.b16 %v345, %v341
    %v410 = vpack.c.b16 %v346, %v342
    %475 = vmatprep.subr.bf16.mxu0 %v348
    %476 = vmatpush1.bf16.msra.mxu0 %v347
    %477 = vmatprep.subr.bf16.mxu0 %v352
    %478 = vmatpush1.bf16.msra.mxu0 %v351
    %479 = vmatprep.subr.bf16.mxu0 %v356
    %480 = vmatpush1.bf16.msra.mxu0 %v355
    %481 = vmatprep.subr.bf16.mxu0 %v360
    %482 = vmatpush1.bf16.msra.mxu0 %v359
    %483 = vmatprep.subr.bf16.mxu0 %v364
    %484 = vmatpush1.bf16.msra.mxu0 %v363
    %485 = vmatprep.subr.bf16.mxu0 %v368
    %486 = vmatpush1.bf16.msra.mxu0 %v367
    %487 = vmatprep.subr.bf16.mxu0 %v372
    %488 = vmatpush1.bf16.msra.mxu0 %v371
    %489 = vmatprep.subr.bf16.mxu0 %v376
    %490 = vmatpush1.bf16.msra.mxu0 %v375
    %491 = vmatprep.subr.bf16.mxu0 %v380
    %492 = vmatpush1.bf16.msra.mxu0 %v379
    %493 = vmatprep.subr.bf16.mxu0 %v384
    %494 = vmatpush1.bf16.msra.mxu0 %v383
    %495 = vmatprep.subr.bf16.mxu0 %v388
    %496 = vmatpush1.bf16.msra.mxu0 %v387
    %497 = vmatprep.subr.bf16.mxu0 %v392
    %498 = vmatpush1.bf16.msra.mxu0 %v391
    %499 = vmatprep.subr.bf16.mxu0 %v396
    %500 = vmatpush1.bf16.msra.mxu0 %v395
    %501 = vmatprep.subr.bf16.mxu0 %v400
    %502 = vmatpush1.bf16.msra.mxu0 %v399
    %503 = vmatprep.subr.bf16.mxu0 %v404
    %504 = vmatpush1.bf16.msra.mxu0 %v403
    %505 = vmatprep.subr.bf16.mxu0 %v408
    %506 = vmatpush1.bf16.msra.mxu0 %v407
    %507 = vmatprep.mubr.bf16.mxu0 %v68
    %508 = vmatmul.mubr.bf16.gmra.mrb[0].mxu0 %v67
    %v509 = vpop.f32.mrb[0].mxu0
    %v510 = vadd.f32 %v138, %v509
    %v511 = vpop.f32.mrb[0].mxu0
    %v512 = vadd.f32 %v142, %v511
    %v513 = vpop.f32.mrb[0].mxu0
    %v514 = vadd.f32 %v138, %v513
    %v515 = vpop.f32.mrb[0].mxu0
    %v516 = vadd.f32 %v142, %v515
    %517 = vdwg.mxu0
    %518 = vmatprep.subr.bf16.mxu0 %v350
    %519 = vmatpush1.bf16.msra.mxu0 %v349
    %520 = vmatprep.subr.bf16.mxu0 %v354
    %521 = vmatpush1.bf16.msra.mxu0 %v353
    %522 = vmatprep.subr.bf16.mxu0 %v358
    %523 = vmatpush1.bf16.msra.mxu0 %v357
    %524 = vmatprep.subr.bf16.mxu0 %v362
    %525 = vmatpush1.bf16.msra.mxu0 %v361
    %526 = vmatprep.subr.bf16.mxu0 %v366
    %527 = vmatpush1.bf16.msra.mxu0 %v365
    %528 = vmatprep.subr.bf16.mxu0 %v370
    %529 = vmatpush1.bf16.msra.mxu0 %v369
    %530 = vmatprep.subr.bf16.mxu0 %v374
    %531 = vmatpush1.bf16.msra.mxu0 %v373
    %532 = vmatprep.subr.bf16.mxu0 %v378
    %533 = vmatpush1.bf16.msra.mxu0 %v377
    %534 = vmatprep.subr.bf16.mxu0 %v382
    %535 = vmatpush1.bf16.msra.mxu0 %v381
    %536 = vmatprep.subr.bf16.mxu0 %v386
    %537 = vmatpush1.bf16.msra.mxu0 %v385
    %538 = vmatprep.subr.bf16.mxu0 %v390
    %539 = vmatpush1.bf16.msra.mxu0 %v389
    %540 = vmatprep.subr.bf16.mxu0 %v394
    %541 = vmatpush1.bf16.msra.mxu0 %v393
    %542 = vmatprep.subr.bf16.mxu0 %v398
    %543 = vmatpush1.bf16.msra.mxu0 %v397
    %544 = vmatprep.subr.bf16.mxu0 %v402
    %545 = vmatpush1.bf16.msra.mxu0 %v401
    %546 = vmatprep.subr.bf16.mxu0 %v406
    %547 = vmatpush1.bf16.msra.mxu0 %v405
    %548 = vmatprep.subr.bf16.mxu0 %v410
    %549 = vmatpush1.bf16.msra.mxu0 %v409
    %550 = vmatprep.mubr.bf16.mxu0 %v68
    %551 = vmatmul.mubr.bf16.gmra.mrb[0].mxu0 %v67
    %v552 = vpop.f32.mrb[0].mxu0
    %v553 = vadd.f32 %v146, %v552
    %v554 = vpop.f32.mrb[0].mxu0
    %v555 = vadd.f32 %v150, %v554
    %v556 = vpop.f32.mrb[0].mxu0
    %v557 = vadd.f32 %v146, %v556
    %v558 = vpop.f32.mrb[0].mxu0
    %v559 = vadd.f32 %v150, %v558
    %560 = vdwg.mxu0
    %v561 = vpack.c.bf16 %v514, %v510
    %v562 = vpack.c.bf16 %v516, %v512
    %v563 = vpack.c.bf16 %v557, %v553
    %v564 = vpack.c.bf16 %v559, %v555
    %v569 = vunpack.c.l.b16 %v561
    %v570 = vunpack.c.l.b16 %v562
    %v571 = vunpack.c.l.b16 %v563
    %v572 = vunpack.c.l.b16 %v564
    %v573 = vunpack.c.h.b16 %v561
    %v574 = vunpack.c.h.b16 %v562
    %v575 = vunpack.c.h.b16 %v563
    %v576 = vunpack.c.h.b16 %v564
    %v577 = vpack.c.b16 %v570, %v569
    %v578 = vpack.c.b16 %v572, %v571
    %v579 = vpack.c.b16 %v574, %v573
    %v580 = vpack.c.b16 %v576, %v575
    %585 = vst [vmem:[#allocation7] sm:$0xff] %v577
    %586 = vst [vmem:[#allocation7 + $0x8] sm:$0xff] %v578
    %587 = vst [vmem:[#allocation7 + $0x10] sm:$0xff] %v579
    %588 = vst [vmem:[#allocation7 + $0x18] sm:$0xff] %v580
    // Predicated region
    $region22: #{tpu_custom_call.1} parent=1 // pred_check
      _
    $region23: #{tpu_custom_call.1} parent=1 // pred_check_branch
      %590 = sbr.rel (0) target = $region25
    $region24: #{tpu_custom_call.1} parent=1 // pred_region
      %s592 = ssub.s32 512, 512
      %593 = vsyncadd [#allocation4], %s592
      %s594 = sshll.u32 [#allocation7], 4
      %s595 = int_to_ptr.vmem [resolvable:$true] %s594
      %600 = dma.vmem_to_hbm [thread:$0]  %s595, 512, %s3, [#allocation4], 256, 256, 16
    $region25: #{tpu_custom_call.1} parent=1 // pred_fallthru
      _
    // Predicated region
    $region26: #{tpu_custom_call.1} parent=1 // pred_check
      _
    $region27: #{tpu_custom_call.1} parent=1 // pred_check_branch
      %602 = sbr.rel (0) target = $region29
    $region28: #{tpu_custom_call.1} parent=1 // pred_region
      %603 = dma.done [#allocation4], 512
    $region29: #{tpu_custom_call.1} parent=1 // pred_fallthru
      _
    %604 = vsyncpa [#allocation3], 1
    %605 = vsyncpa [#allocation6], 1
    %606 = vsyncpa [#allocation4], 1

</llo_original>
